<compile_context>
chip_gen: v6e
topology: v6e:2x2x1
jax: 0.10.0
libtpu: 0.0.40
codegen_flags: <defaults>
</compile_context>

<pallas_src>
import math
import jax
import jax.numpy as jnp
from jax.experimental import pallas as pl
from jax.experimental.pallas import tpu as pltpu


def _round_up(x, m):
    return ((x + m - 1) // m) * m


# ----------------------- Pallas kernel -----------------------

def _linear_kernel(x_ref, w_ref, b_ref, o_ref):
    # x_ref: (TM, K) f32, w_ref: (K, Np) bf16, b_ref: (1, Np) f32,
    # o_ref: (TM, Np) bf16.
    # Cast x to bf16 in-kernel (free on the VPU; kernel is store-bound),
    # f32 MXU accumulation, f32 bias add, pack to bf16 only for the store.
    x_bf = x_ref[...].astype(jnp.bfloat16)
    acc = jnp.dot(x_bf, w_ref[...], preferred_element_type=jnp.float32)
    o_ref[...] = (acc + b_ref[...]).astype(o_ref.dtype)


def linear_pallas(x2d, w_bf16, b_f32, *, max_tile_rows=2048):
    """x2d: (M, K) f32, w_bf16: (K, Np) with Np % 128 == 0, b_f32: (Np,)
    -> (M, Np) bf16 logits (lane-dense; caller slices off padded columns)."""
    M, K = x2d.shape
    Kw, Np = w_bf16.shape
    assert K == Kw
    assert Np % 128 == 0, "pad the class dim to a multiple of 128 lanes"

    # Row tile: biggest tile up to max_tile_rows, 16-aligned (bf16 output
    # sublane packing), capped so the row grid has >= 2 steps for mid/large M
    # -> both v7x TensorCores get work; harmless on single-TC v5e/v6e.
    tm = min(max_tile_rows, max(16, _round_up(pl.cdiv(M, 2), 16)))
    grid_m = pl.cdiv(M, tm)

    b2d = b_f32.reshape(1, Np)

    cost = pl.CostEstimate(
        flops=2 * M * K * Np,
        transcendentals=0,
        bytes_accessed=M * K * 4 + K * Np * 2 + Np * 4 + M * Np * 2,
    )

    return pl.pallas_call(
        _linear_kernel,
        out_shape=jax.ShapeDtypeStruct((M, Np), jnp.bfloat16),
        grid=(grid_m,),
        in_specs=[
            pl.BlockSpec((tm, K), lambda i: (i, 0)),   # streamed token tiles
            pl.BlockSpec((K, Np), lambda i: (0, 0)),   # resident weight
            pl.BlockSpec((1, Np), lambda i: (0, 0)),   # resident bias
        ],
        out_specs=pl.BlockSpec((tm, Np), lambda i: (i, 0)),
        compiler_params=pltpu.CompilerParams(
            dimension_semantics=("parallel",)),
        cost_estimate=cost,
    )(x2d, w_bf16, b2d)


# ----------------------- MLPDecoder wrapper -----------------------

class MLPDecoderPallas:
    """Mirror of the PyTorch MLPDecoder: Linear(base_feat, sum(num_classes))
    followed by a split along the last dim.  Wrap the forward in jax.jit so
    the per-class slices fuse with the pallas_call instead of materializing.
    """

    def __init__(self, base_feat_size, num_classes, key, *, use_pallas=None):
        self.base_feat_size = base_feat_size
        self.num_classes = tuple(num_classes)
        self.n_out = sum(self.num_classes)
        # Lane-dense padded class dim: exactly the next multiple of 128.
        # Do NOT pad wider (e.g. 256) — the op is HBM-store-bound, not MXU.
        self.n_pad = _round_up(self.n_out, 128)
        # None -> auto (XLA dot+bias fallback for tiny token counts),
        # True/False -> force.
        self.use_pallas = use_pallas

        # Deterministic init matching nn.Linear's default (uniform in
        # [-1/sqrt(fan_in), 1/sqrt(fan_in)]); stored as (in, out) so the
        # kernel does x @ W directly.
        k_w, k_b = jax.random.split(key)
        bound = 1.0 / math.sqrt(base_feat_size)
        w = jax.random.uniform(k_w, (base_feat_size, self.n_out),
                               jnp.float32, -bound, bound)
        b = jax.random.uniform(k_b, (self.n_out,), jnp.float32, -bound, bound)

        # Weight stored bf16 with zero-padded columns; bias stays f32.
        # Padded output columns are only correct because both padded weight
        # columns and padded bias entries are exactly zero.
        self.w_padded = jnp.pad(
            w, ((0, 0), (0, self.n_pad - self.n_out))).astype(jnp.bfloat16)
        self.b_padded = jnp.pad(b, (0, self.n_pad - self.n_out))

    def __call__(self, x):
        # x: (..., base_feat_size) -- same broadcasting as nn.Linear.
        lead = x.shape[:-1]
        x2d = x.reshape(-1, self.base_feat_size)
        M = x2d.shape[0]

        use_pallas = self.use_pallas
        if use_pallas is None:
            # Fallback: below ~a few row tiles the pallas_call launch +
            # pipeline prologue/epilogue dominate; fused XLA dot is cheaper.
            use_pallas = M >= 1024

        if use_pallas:
            logits2d = linear_pallas(x2d, self.w_padded, self.b_padded)
        else:
            logits2d = (jnp.dot(x2d.astype(jnp.bfloat16), self.w_padded,
                                preferred_element_type=jnp.float32)
                        + self.b_padded).astype(jnp.bfloat16)

        logits = logits2d.reshape(*lead, self.n_pad)
        # torch.split(logits, num_classes, dim=-1); padded columns dropped.
        # Kept inside the (jitted) forward so XLA fuses the slices.
        splits, off = [], 0
        for n in self.num_classes:
            splits.append(logits[..., off:off + n])
            off += n
        return tuple(splits)


# ----------------------- Reference + main -----------------------

def _reference(x, w_bf16, b, num_classes):
    # Same numerics as the kernel: bf16 operands, f32 accumulate, f32 bias,
    # bf16 final cast.
    logits = (jnp.einsum("...k,kn->...n", x.astype(jnp.bfloat16), w_bf16,
                         preferred_element_type=jnp.float32) + b
              ).astype(jnp.bfloat16)
    splits, off = [], 0
    for n in num_classes:
        splits.append(logits[..., off:off + n])
        off += n
    return tuple(splits)


if __name__ == "__main__":
    key = jax.random.PRNGKey(0)
    k_x, k_params = jax.random.split(key)

    # Small synthetic cfg: base_feat_size=32, num_classes=[8, 16, 24].
    base_feat_size = 32
    num_classes = (8, 16, 24)

    # Input: (batch=2, seq=8, feat=32).
    x = jax.random.normal(k_x, (2, 8, base_feat_size), jnp.float32)

    # Force the Pallas path so the kernel is exercised even at this tiny M
    # (the auto mode would take the XLA fallback here, as recommended).
    decoder = MLPDecoderPallas(base_feat_size, num_classes, k_params,
                               use_pallas=True)
    # Jit the whole forward so the per-class slices fuse with the pallas_call.
    apply = jax.jit(decoder.__call__)
    outs = jax.block_until_ready(apply(x))

    # Sanity check against a pure-JAX reference with identical numerics.
    n_out = sum(num_classes)
    refs = _reference(x, decoder.w_padded[:, :n_out],
                      decoder.b_padded[:n_out], num_classes)
    assert len(outs) == len(num_classes)
    for o, r, n in zip(outs, refs, num_classes):
        assert o.shape == (2, 8, n), o.shape
        assert jnp.allclose(o.astype(jnp.float32), r.astype(jnp.float32),
                            atol=2e-2, rtol=2e-2), (
            float(jnp.max(jnp.abs(o.astype(jnp.float32)
                                  - r.astype(jnp.float32)))))

    print("KERNEL_OK")
</pallas_src>

<mosaic_0001>
module attributes {stable_mosaic.version = 11 : i64} {
  func.func @_linear_kernel(%arg0: i32, %arg1: memref<16x32xf32, #tpu.memory_space<vmem>>, %arg2: memref<32x128xbf16, #tpu.memory_space<vmem>>, %arg3: memref<1x128xf32, #tpu.memory_space<vmem>>, %arg4: memref<16x128xbf16, #tpu.memory_space<vmem>>) attributes {dimension_semantics = [#tpu.dimension_semantics<parallel>], iteration_bounds = array<i64: 1>, scalar_prefetch = 0 : i64, scratch_operands = 0 : i64, tpu.core_type = #tpu.core_type<tc>, window_params = [{transform_indices = @transform_0, window_bounds = array<i64: 16, 32>}, {pipeline_mode = #tpu.pipeline_mode<synchronous>, transform_indices = @transform_1, window_bounds = array<i64: 32, 128>}, {pipeline_mode = #tpu.pipeline_mode<synchronous>, transform_indices = @transform_2, window_bounds = array<i64: 1, 128>}, {transform_indices = @transform_3, window_bounds = array<i64: 16, 128>}]} {
    %c0 = arith.constant 0 : index
    %c0_0 = arith.constant 0 : index
    %0 = vector.load %arg1[%c0, %c0_0] : memref<16x32xf32, #tpu.memory_space<vmem>>, vector<16x32xf32>
    %1 = arith.truncf %0 : vector<16x32xf32> to vector<16x32xbf16>
    %c0_1 = arith.constant 0 : index
    %c0_2 = arith.constant 0 : index
    %2 = vector.load %arg2[%c0_1, %c0_2] : memref<32x128xbf16, #tpu.memory_space<vmem>>, vector<32x128xbf16>
    %cst = arith.constant dense<0.000000e+00> : vector<16x128xf32>
    %3 = tpu.matmul %1, %2, %cst {dimension_numbers = #tpu.dot_dimension_numbers<[1], [0], [0], [1], [0, 0, 1, 1], [], []>} : vector<16x32xbf16>, vector<32x128xbf16>, vector<16x128xf32> -> vector<16x128xf32>
    %c0_3 = arith.constant 0 : index
    %c0_4 = arith.constant 0 : index
    %4 = vector.load %arg3[%c0_3, %c0_4] : memref<1x128xf32, #tpu.memory_space<vmem>>, vector<1x128xf32>
    %5 = vector.broadcast %4 : vector<1x128xf32> to vector<16x128xf32>
    %6 = arith.addf %3, %5 : vector<16x128xf32>
    %7 = arith.truncf %6 : vector<16x128xf32> to vector<16x128xbf16>
    %c0_5 = arith.constant 0 : index
    %c0_6 = arith.constant 0 : index
    %8 = vector.load %arg4[%c0_5, %c0_6] : memref<16x128xbf16, #tpu.memory_space<vmem>>, vector<16x128xbf16>
    tpu.vector_store %arg4[%c0_5, %c0_6], %7 {strides = array<i32>} : memref<16x128xbf16, #tpu.memory_space<vmem>>, vector<16x128xbf16>,
    return
  }
  func.func @transform_0(%arg0: i32) -> (i32, i32) {
    %c0_i32 = arith.constant 0 : i32
    %c0_i32_0 = arith.constant 0 : i32
    return %arg0, %c0_i32 : i32, i32
  }
  func.func @transform_1(%arg0: i32) -> (i32, i32) {
    %c0_i32 = arith.constant 0 : i32
    %c0_i32_0 = arith.constant 0 : i32
    %c0_i32_1 = arith.constant 0 : i32
    return %c0_i32, %c0_i32_0 : i32, i32
  }
  func.func @transform_2(%arg0: i32) -> (i32, i32) {
    %c0_i32 = arith.constant 0 : i32
    %c0_i32_0 = arith.constant 0 : i32
    %c0_i32_1 = arith.constant 0 : i32
    return %c0_i32, %c0_i32_0 : i32, i32
  }
  func.func @transform_3(%arg0: i32) -> (i32, i32) {
    %c0_i32 = arith.constant 0 : i32
    %c0_i32_0 = arith.constant 0 : i32
    return %arg0, %c0_i32 : i32, i32
  }
}

</mosaic_0001>

<llo_original>
// kernel: a_call__.1
$region0: #{a_call__.1}
  #allocation0 [shape = 'u32[]', space=smem, size = 0x4, offset = 0x4, fixed_abs, tag = 'smem constant byte address 0x4 - core index']
  #allocation1 [shape = 'u32[144,128]{1,0:T(1,128)}', space=vmem, size = 0x12000, scoped, tag = 'internal scratch']
  %s0 = inlined_call_operand.hbm [shape: f32[16,32], index: 0, kind: input, shape index: {}]
  %s1 = inlined_call_operand.hbm [shape: bf16[32,128], index: 1, kind: input, shape index: {}]
  %s2 = inlined_call_operand.vmem [shape: f32[1,128], index: 2, kind: input, shape index: {}]
  %s3 = inlined_call_operand.vmem [shape: bf16[16,128], index: 3, kind: output, shape index: {}]
  %s4 = sld [smem:[#allocation0]]
  $region30: #{a_call__.1} parent=0
    _
  %s6 = ssub.s32 1, %s4
  %s7 = scalar_select 0, %s6, %s4
  $region1: #{a_call__.1} parent=0
    #allocation2 [shape = 'u8[8192]{0}', space=vmem, size = 0x2000, scoped, tag = 'input window, operand 0, single buffered']
    #allocation3 [shape = 's32[1]{0}', space=sflag, size = 0x4, scoped, tag = 'scoped memory for a_call__.1']
    #allocation4 [shape = 'u8[8192]{0}', space=vmem, size = 0x2000, scoped, tag = 'input window, operand 1, single buffered']
    #allocation5 [shape = 's32[1]{0}', space=sflag, size = 0x4, scoped, tag = 'scoped memory for a_call__.1']
    %8 = vsyncpa [#allocation3], 0
    %9 = vsyncpa [#allocation5], 0
    // Predicated region
    $region2: #{a_call__.1} parent=1 // pred_check
      _
    $region3: #{a_call__.1} parent=1 // pred_check_branch
      %11 = sbr.rel (0) target = $region5
    $region4: #{a_call__.1} parent=1 // pred_region
      %s13 = ssub.s32 256, 256
      %14 = vsyncadd [#allocation3], %s13
      %s15 = sshll.u32 [#allocation2], 4
      %s16 = int_to_ptr.vmem [resolvable:$true] %s15
      %21 = dma.hbm_to_vmem [thread:$0]  %s0, 256, %s16, [#allocation3], 128, 128, 8
    $region5: #{a_call__.1} parent=1 // pred_fallthru
      _
    // Predicated region
    $region6: #{a_call__.1} parent=1 // pred_check
      _
    $region7: #{a_call__.1} parent=1 // pred_check_branch
      %23 = sbr.rel (0) target = $region9
    $region8: #{a_call__.1} parent=1 // pred_region
      %s25 = ssub.s32 256, 256
      %26 = vsyncadd [#allocation5], %s25
      %s27 = sshll.u32 [#allocation4], 4
      %s28 = int_to_ptr.vmem [resolvable:$true] %s27
      %33 = dma.hbm_to_vmem [thread:$0]  %s1, 256, %s28, [#allocation5], 64, 64, 4
    $region9: #{a_call__.1} parent=1 // pred_fallthru
      _
    // Predicated region
    $region10: #{a_call__.1} parent=1 // pred_check
      _
    $region11: #{a_call__.1} parent=1 // pred_check_branch
      %35 = sbr.rel (0) target = $region13
    $region12: #{a_call__.1} parent=1 // pred_region
      _
    $region13: #{a_call__.1} parent=1 // pred_fallthru
      _
    // Predicated region
    $region14: #{a_call__.1} parent=1 // pred_check
      _
    $region15: #{a_call__.1} parent=1 // pred_check_branch
      %37 = sbr.rel (0) target = $region17
    $region16: #{a_call__.1} parent=1 // pred_region
      %38 = dma.done [#allocation3], 256
    $region17: #{a_call__.1} parent=1 // pred_fallthru
      _
    // Predicated region
    $region18: #{a_call__.1} parent=1 // pred_check
      _
    $region19: #{a_call__.1} parent=1 // pred_check_branch
      %40 = sbr.rel (0) target = $region21
    $region20: #{a_call__.1} parent=1 // pred_region
      %41 = dma.done [#allocation5], 256
    $region21: #{a_call__.1} parent=1 // pred_fallthru
      _
    %v43 = vld [vmem:[#allocation2] sm:$0xff]
    %v44 = vld [vmem:[#allocation2 + $0x8] sm:$0xff]
    %v45 = vpack.c.bf16 %v44, %v43
    %v46 = vld [vmem:[#allocation4] sm:$0xf]
    %v47 = vld [vmem:[#allocation4 + $0x4] sm:$0xf]
    %v48 = vld [vmem:[#allocation4 + $0x8] sm:$0xf]
    %v49 = vld [vmem:[#allocation4 + $0xc] sm:$0xf]
    %v50 = vld [vmem:[%s2] sm:$0x1]
    %v52 = vlaneseq
    %v53 = vshrl.u32 %v52, 7
    %v54 = vsub.s32 0, %v53
    %v55 = vrot.slane %v50, %v54
    %v61 = vunpack.c.l.b16 %v46
    %v62 = vunpack.c.l.b16 %v47
    %v63 = vunpack.c.l.b16 %v48
    %v64 = vunpack.c.l.b16 %v49
    %v65 = vpack.c.b16 %v62, %v61
    %v66 = vpack.c.b16 %v64, %v63
    %vm69 = vcmask 261120
    %v71 = vsel %vm69, %v45, 0
    %73 = vmatprep.subr.bf16.mxu0 0
    %74 = vmatpush1.bf16.msra.mxu0 0
    %75 = vmatprep.subr.bf16.mxu0 0
    %76 = vmatpush1.bf16.msra.mxu0 0
    %77 = vmatprep.subr.bf16.mxu0 0
    %78 = vmatpush1.bf16.msra.mxu0 0
    %79 = vmatprep.subr.bf16.mxu0 0
    %80 = vmatpush1.bf16.msra.mxu0 0
    %81 = vmatprep.subr.bf16.mxu0 0
    %82 = vmatpush1.bf16.msra.mxu0 0
    %83 = vmatprep.subr.bf16.mxu0 0
    %84 = vmatpush1.bf16.msra.mxu0 0
    %85 = vmatprep.subr.bf16.mxu0 0
    %86 = vmatpush1.bf16.msra.mxu0 %v66
    %87 = vmatprep.subr.bf16.mxu0 0
    %88 = vmatpush1.bf16.msra.mxu0 %v65
    %89 = vmatprep.subr.bf16.mxu0 0
    %90 = vmatpush2.bf16.msra.mxu0 0
    %91 = vmatprep.subr.bf16.mxu0 0
    %92 = vmatpush2.bf16.msra.mxu0 0
    %93 = vmatprep.subr.bf16.mxu0 0
    %94 = vmatpush2.bf16.msra.mxu0 0
    %95 = vmatprep.subr.bf16.mxu0 0
    %96 = vmatpush2.bf16.msra.mxu0 0
    %97 = vmatprep.subr.bf16.mxu0 0
    %98 = vmatpush2.bf16.msra.mxu0 0
    %99 = vmatprep.subr.bf16.mxu0 0
    %100 = vmatpush2.bf16.msra.mxu0 0
    %101 = vmatprep.subr.bf16.mxu0 0
    %102 = vmatpush2.bf16.msra.mxu0 0
    %103 = vmatprep.subr.bf16.mxu0 0
    %104 = vmatpush2.bf16.msra.mxu0 0
    %105 = vmatprep.mubr.bf16.mxu0 0
    %106 = vmatmul.mubr.bf16.gmra.mxu0 %v71
    %v107 = vpop.f32.mrf.mxu0
    %v108 = vadd.f32 %v55, %v107
    %v109 = vpop.f32.mrf.mxu0
    %v110 = vpop.f32.mrf.mxu0
    %v111 = vadd.f32 %v55, %v110
    %v112 = vpop.f32.mrf.mxu0
    %113 = vdwg.mxu0
    %v114 = vpack.c.bf16 %v111, %v108
    %v116 = vunpack.c.l.b16 %v114
    %v117 = vunpack.c.h.b16 %v114
    %v118 = vpack.c.b16 %v116, %v116
    %v119 = vpack.c.b16 %v117, %v117
    %122 = vst [vmem:[%s3] sm:$0xf] %v118
    %123 = vst [vmem:[%s3 + $0x4] sm:$0xf] %v119
    // Predicated region
    $region22: #{a_call__.1} parent=1 // pred_check
      _
    $region23: #{a_call__.1} parent=1 // pred_check_branch
      %125 = sbr.rel (0) target = $region25
    $region24: #{a_call__.1} parent=1 // pred_region
      _
    $region25: #{a_call__.1} parent=1 // pred_fallthru
      _
    // Predicated region
    $region26: #{a_call__.1} parent=1 // pred_check
      _
    $region27: #{a_call__.1} parent=1 // pred_check_branch
      %127 = sbr.rel (0) target = $region29
    $region28: #{a_call__.1} parent=1 // pred_region
      _
    $region29: #{a_call__.1} parent=1 // pred_fallthru
      _
    %128 = vsyncpa [#allocation3], 1
    %129 = vsyncpa [#allocation5], 1

</llo_original>
